<compile_context>
chip_gen: v6e
topology: v6e:2x2x1
jax: 0.10.0
libtpu: 0.0.40
codegen_flags: <defaults>
</compile_context>

<pallas_src>
from functools import reduce
from operator import mul

import numpy as np
import jax
import jax.numpy as jnp
from jax.experimental import pallas as pl
from jax.experimental.pallas import tpu as pltpu

NEG_BIG = -1e30  # effectively -inf for softmax masking, without inf arithmetic


def _round_up(x, m):
    return ((x + m - 1) // m) * m


def _cdiv(a, b):
    return (a + b - 1) // b


# ----------------------------------------------------------------------------
# Kernel: fused (linear -> online softmax -> combined placement+marginal)
# ----------------------------------------------------------------------------
def _as_head_kernel(x_ref, w_ref, b_ref, c_ref, out_ref, m_ref, l_ref, acc_ref):
    j = pl.program_id(1)  # n_valid tile index (reduction / "arbitrary" axis)

    @pl.when(j == 0)
    def _init():
        m_ref[...] = jnp.full_like(m_ref, NEG_BIG)
        l_ref[...] = jnp.zeros_like(l_ref)
        acc_ref[...] = jnp.zeros_like(acc_ref)

    # Linear on this NV tile: (TB, F) @ (F, TNV) + (1, TNV).
    # Padded NV columns carry zero weights and a NEG_BIG bias, so their
    # logits are ~-inf and vanish in the softmax.  Bias/mask stay f32.
    logits = jnp.dot(x_ref[...], w_ref[...],
                     preferred_element_type=jnp.float32) + b_ref[...]

    # Online (flash-style) softmax update across NV tiles.
    m_prev = m_ref[...]
    m_new = jnp.maximum(m_prev, jnp.max(logits, axis=1, keepdims=True))
    alpha = jnp.exp(m_prev - m_new)               # == 0 on the first tile
    p = jnp.exp(logits - m_new)                   # padded cols underflow to 0
    l_ref[...] = alpha * l_ref[...] + jnp.sum(p, axis=1, keepdims=True)
    acc_ref[...] = alpha * acc_ref[...] + jnp.dot(
        p.astype(c_ref.dtype), c_ref[...], preferred_element_type=jnp.float32)
    m_ref[...] = m_new

    @pl.when(j == pl.num_programs(1) - 1)
    def _finalize():
        s = l_ref[...]
        inv = pl.reciprocal(s, approx=True)       # EUP vrcp (free slot)
        inv = inv * (2.0 - s * inv)               # one Newton step -> ~f32 exact
        out_ref[...] = (acc_ref[...] * inv).astype(out_ref.dtype)


# ----------------------------------------------------------------------------
# Constant preparation (done once, outside the per-call path)
# ----------------------------------------------------------------------------
def build_fused_marginal_matrix(mask, outcomes_shape):
    """C = placement_matrix @ concat([M_0..M_{n-1}], axis=1), built directly
    from state indices: C[v, off_c + outcome_c(valid_state_v)] = 1.
    Shape (n_valid, sum_k); never materializes the (n_valid, n_total) matrix."""
    mask = np.asarray(mask, dtype=bool)
    valid = np.flatnonzero(mask)                               # (n_valid,)
    multi = np.unravel_index(valid, outcomes_shape)            # per-concept outcome
    ks = [int(k) for k in outcomes_shape]
    c_mat = np.zeros((valid.shape[0], sum(ks)), np.float32)
    rows = np.arange(valid.shape[0])
    off = 0
    for c, k in enumerate(ks):
        c_mat[rows, off + multi[c]] = 1.0
        off += k
    return c_mat


class AdmissibleStatesHeadPallas:
    """Pallas-TPU implementation of AdmissibleStatesHead.forward."""

    def __init__(self, weight, bias, mask, outcomes_shape, concept_names, *,
                 block_batch=256, block_nv=1024, use_bf16=False):
        weight = np.asarray(weight, np.float32)          # (n_valid, F)
        bias = np.asarray(bias, np.float32)              # (n_valid,)
        n_valid, F = weight.shape

        self.concept_names = list(concept_names)
        self.ks = [int(k) for k in outcomes_shape]
        self.sum_k = sum(self.ks)
        self.n_valid = n_valid
        self.in_features = F
        self.block_batch = int(block_batch)
        self.use_bf16 = bool(use_bf16)
        self._mdt = jnp.bfloat16 if use_bf16 else jnp.float32

        # Fused placement+marginal matrix (constant of the mask), built once.
        c_mat = build_fused_marginal_matrix(mask, outcomes_shape)
        assert c_mat.shape == (n_valid, self.sum_k)

        # ---- Padding / tiling constants ------------------------------------
        self.F_pad = _round_up(F, 8)                     # contraction: 8 only
        self.TNV = min(_round_up(block_nv, 128), _round_up(n_valid, 128))
        self.NV_pad = _round_up(n_valid, self.TNV)       # last NV tile nonempty
        self.n_nv = self.NV_pad // self.TNV
        self.SK_pad = _round_up(self.sum_k, 128)         # lane-dense output slab

        # ---- Padded resident operands (device constants) -------------------
        w_p = np.zeros((self.F_pad, self.NV_pad), np.float32)
        w_p[:F, :n_valid] = weight.T
        b_p = np.full((1, self.NV_pad), NEG_BIG, np.float32)
        b_p[0, :n_valid] = bias
        c_p = np.zeros((self.NV_pad, self.SK_pad), np.float32)
        c_p[:n_valid, :self.sum_k] = c_mat

        self.w_p = jnp.asarray(w_p, self._mdt)
        self.b_p = jnp.asarray(b_p, jnp.float32)         # bias + mask stay f32
        self.c_p = jnp.asarray(c_p, self._mdt)           # {0,1}: lossless in bf16

    # -------------------------------------------------------------------------
    def __call__(self, embeddings):
        embeddings = jnp.asarray(embeddings)
        B, F = embeddings.shape
        assert F == self.in_features

        F_pad, TNV, NV_pad, SK_pad, n_nv = (self.F_pad, self.TNV, self.NV_pad,
                                            self.SK_pad, self.n_nv)
        mdt = self._mdt

        # Near-even batch tiles: avoids padding B up to a multiple of block_batch.
        B8 = _round_up(B, 8)
        n_b = _cdiv(B8, min(self.block_batch, B8))
        TB = _round_up(_cdiv(B8, n_b), 8)
        B_pad = TB * n_b

        x_p = jnp.zeros((B_pad, F_pad), mdt).at[:B, :F].set(embeddings.astype(mdt))

        # Single-buffer resident operands when their grid index is constant
        # (single NV tile); otherwise keep default double-buffered streaming.
        resident_wc = (n_nv == 1)

        def _spec(shape, index_map, single_buffer):
            if single_buffer:
                return pl.BlockSpec(shape, index_map, pipeline_mode=pl.Buffered(1))
            return pl.BlockSpec(shape, index_map)

        # Explicit VMEM budget, sized from the actual buffers + headroom.
        itemsize = 2 if self.use_bf16 else 4
        nbuf_wc = 1 if resident_wc else 2
        vmem_est = (
            2 * TB * F_pad * itemsize            # x (double-buffered)
            + nbuf_wc * F_pad * TNV * itemsize   # W tile(s)
            + nbuf_wc * 8 * TNV * 4              # bias tile(s) (sublane-padded)
            + nbuf_wc * TNV * SK_pad * itemsize  # fused-C tile(s)
            + 2 * TB * SK_pad * 4                # out (double-buffered)
            + TB * SK_pad * 4                    # acc scratch
            + 2 * TB * 128 * 4                   # m / l scratch (lane-padded)
            + 6 * TB * TNV * 4                   # logits / exp temporaries
        )
        vmem_limit = int(min(max(vmem_est * 3 // 2 + (4 << 20), 16 << 20), 64 << 20))

        cost = pl.CostEstimate(
            flops=2 * B_pad * F_pad * NV_pad + 2 * B_pad * NV_pad * SK_pad,
            transcendentals=B_pad * NV_pad + B_pad * n_nv,
            bytes_accessed=itemsize * (B_pad * F_pad + F_pad * NV_pad
                                       + NV_pad * SK_pad)
                           + 4 * (NV_pad + B_pad * SK_pad),
        )

        out_full = pl.pallas_call(
            _as_head_kernel,
            grid=(n_b, n_nv),
            in_specs=[
                pl.BlockSpec((TB, F_pad), lambda i, j: (i, 0)),          # x
                _spec((F_pad, TNV), lambda i, j: (0, j), resident_wc),   # W.T tile
                _spec((1, TNV), lambda i, j: (0, j), resident_wc),       # bias tile
                _spec((TNV, SK_pad), lambda i, j: (j, 0), resident_wc),  # fused C
            ],
            out_specs=pl.BlockSpec((TB, SK_pad), lambda i, j: (i, 0)),
            out_shape=jax.ShapeDtypeStruct((B_pad, SK_pad), jnp.float32),
            scratch_shapes=[
                pltpu.VMEM((TB, 1), jnp.float32),       # running row max
                pltpu.VMEM((TB, 1), jnp.float32),       # running denominator
                pltpu.VMEM((TB, SK_pad), jnp.float32),  # output accumulator
            ],
            compiler_params=pltpu.CompilerParams(
                # On v7x, pltpu.CORE_PARALLEL on the batch axis is worth trying
                # (2 TensorCores); "parallel" is the portable default here.
                dimension_semantics=("parallel", "arbitrary"),
                vmem_limit_bytes=vmem_limit,
            ),
            cost_estimate=cost,
        )(x_p, self.w_p, self.b_p, self.c_p)

        # Split the lane-dense slab into per-concept marginals.
        out = {}
        off = 0
        for name, k in zip(self.concept_names, self.ks):
            out[name] = out_full[:B, off:off + k]
            off += k
        return out


# ----------------------------------------------------------------------------
# Synthetic buffer construction + pure-JAX reference (mirrors PyTorch module)
# ----------------------------------------------------------------------------
def prepare_admissible_states_mask(outcomes_shape):
    """Synthetic deterministic rules: state (i0, i1, ...) is admissible iff
    the sum of its concept-outcome indices is not divisible by 3."""
    n_total = reduce(mul, outcomes_shape, 1)
    idx = np.arange(n_total)
    multi = np.unravel_index(idx, outcomes_shape)
    s = np.zeros(n_total, dtype=np.int64)
    for m in multi:
        s += m
    return (s % 3) != 0


def prepare_placement_matrix(mask, n_total):
    """Reference-path only (the kernel path never materializes this matrix)."""
    valid_states = np.flatnonzero(np.asarray(mask, dtype=bool))
    pm = np.zeros((valid_states.shape[0], n_total), dtype=np.float32)
    pm[np.arange(valid_states.shape[0]), valid_states] = 1.0
    return pm


def reference_forward(embeddings, weight, bias, mask, outcomes_shape, concept_names):
    n_total = reduce(mul, outcomes_shape, 1)
    placement = jnp.asarray(prepare_placement_matrix(mask, n_total))
    logits = embeddings @ weight.T + bias
    p_valid = jax.nn.softmax(logits, axis=1)
    p_total = p_valid @ placement
    distr = p_total.reshape((embeddings.shape[0], *outcomes_shape))
    out = {}
    for i, c in enumerate(concept_names):
        other = tuple(j + 1 for j in range(len(concept_names)) if j != i)
        out[c] = distr.sum(axis=other)
    return out


def _make_inputs(key, batch, in_features, n_valid):
    k_x, k_w, k_b = jax.random.split(key, 3)
    embeddings = jax.random.normal(k_x, (batch, in_features), dtype=jnp.float32)
    bound = 1.0 / np.sqrt(in_features)
    weight = jax.random.uniform(k_w, (n_valid, in_features),
                                minval=-bound, maxval=bound, dtype=jnp.float32)
    bias = jax.random.uniform(k_b, (n_valid,),
                              minval=-bound, maxval=bound, dtype=jnp.float32)
    return embeddings, weight, bias


def _check(out, ref, names, rtol, atol):
    for c in names:
        np.testing.assert_allclose(np.asarray(out[c]), np.asarray(ref[c]),
                                   rtol=rtol, atol=atol)


if __name__ == "__main__":
    key = jax.random.PRNGKey(0)
    k1, k2 = jax.random.split(key, 2)

    # ---- Test 1: small demo config, single NV tile, f32 ---------------------
    concepts = {"color": 3, "shape": 4, "size": 2}
    order = list(concepts.keys())
    shape = list(concepts.values())
    mask = prepare_admissible_states_mask(shape)
    n_valid = int(mask.sum())
    emb, w, b = _make_inputs(k1, batch=8, in_features=32, n_valid=n_valid)

    head = AdmissibleStatesHeadPallas(w, b, mask, shape, order)
    out = head(emb)
    jax.block_until_ready(out)
    ref = reference_forward(emb, w, b, mask, shape, order)
    _check(out, ref, order, rtol=1e-5, atol=1e-5)

    # ---- Test 2: multi NV tile (online softmax) + uneven batch tiling, f32 --
    concepts2 = {"a": 8, "b": 8, "c": 8}
    order2 = list(concepts2.keys())
    shape2 = list(concepts2.values())
    mask2 = prepare_admissible_states_mask(shape2)
    n_valid2 = int(mask2.sum())
    emb2, w2, b2 = _make_inputs(k2, batch=37, in_features=20, n_valid=n_valid2)

    head2 = AdmissibleStatesHeadPallas(w2, b2, mask2, shape2, order2,
                                       block_batch=16, block_nv=128)
    out2 = head2(emb2)
    jax.block_until_ready(out2)
    ref2 = reference_forward(emb2, w2, b2, mask2, shape2, order2)
    _check(out2, ref2, order2, rtol=1e-5, atol=1e-5)

    # ---- Test 3: bf16 storage/matmul path (f32 accumulate + f32 bias/mask) --
    head3 = AdmissibleStatesHeadPallas(w, b, mask, shape, order, use_bf16=True)
    out3 = head3(emb)
    jax.block_until_ready(out3)
    _check(out3, ref, order, rtol=5e-2, atol=1e-2)

    print("KERNEL_OK")
</pallas_src>

<mosaic_0001>
module attributes {stable_mosaic.version = 11 : i64} {
  func.func @_as_head_kernel(%arg0: i32, %arg1: i32, %arg2: memref<8x32xf32, #tpu.memory_space<vmem>>, %arg3: memref<32x128xf32, #tpu.memory_space<vmem>>, %arg4: memref<1x128xf32, #tpu.memory_space<vmem>>, %arg5: memref<128x128xf32, #tpu.memory_space<vmem>>, %arg6: memref<8x128xf32, #tpu.memory_space<vmem>>, %arg7: memref<8x1xf32, #tpu.memory_space<vmem>>, %arg8: memref<8x1xf32, #tpu.memory_space<vmem>>, %arg9: memref<8x128xf32, #tpu.memory_space<vmem>>) attributes {dimension_semantics = [#tpu.dimension_semantics<parallel>, #tpu.dimension_semantics<arbitrary>], iteration_bounds = array<i64: 1, 1>, scalar_prefetch = 0 : i64, scratch_operands = 3 : i64, tpu.core_type = #tpu.core_type<tc>, window_params = [{transform_indices = @transform_0, window_bounds = array<i64: 8, 32>}, {pipeline_mode = #tpu.pipeline_mode<synchronous>, transform_indices = @transform_1, window_bounds = array<i64: 32, 128>}, {pipeline_mode = #tpu.pipeline_mode<synchronous>, transform_indices = @transform_2, window_bounds = array<i64: 1, 128>}, {pipeline_mode = #tpu.pipeline_mode<synchronous>, transform_indices = @transform_3, window_bounds = array<i64: 128, 128>}, {transform_indices = @transform_4, window_bounds = array<i64: 8, 128>}]} {
    %c0_i32 = arith.constant 0 : i32
    %0 = arith.cmpi eq, %arg1, %c0_i32 : i32
    %1 = arith.extui %0 : i1 to i32
    %c0_i32_0 = arith.constant 0 : i32
    %2 = arith.cmpi ne, %1, %c0_i32_0 : i32
    scf.if %2 {
      %cst_25 = arith.constant -1.000000e+30 : f32
      %35 = vector.broadcast %cst_25 : f32 to vector<8x1xf32>
      %c0_26 = arith.constant 0 : index
      %c0_27 = arith.constant 0 : index
      %36 = vector.load %arg7[%c0_26, %c0_27] : memref<8x1xf32, #tpu.memory_space<vmem>>, vector<8x1xf32>
      tpu.vector_store %arg7[%c0_26, %c0_27], %35 {strides = array<i32>} : memref<8x1xf32, #tpu.memory_space<vmem>>, vector<8x1xf32>,
      %cst_28 = arith.constant 0.000000e+00 : f32
      %37 = vector.broadcast %cst_28 : f32 to vector<8x1xf32>
      %c0_29 = arith.constant 0 : index
      %c0_30 = arith.constant 0 : index
      %38 = vector.load %arg8[%c0_29, %c0_30] : memref<8x1xf32, #tpu.memory_space<vmem>>, vector<8x1xf32>
      tpu.vector_store %arg8[%c0_29, %c0_30], %37 {strides = array<i32>} : memref<8x1xf32, #tpu.memory_space<vmem>>, vector<8x1xf32>,
      %cst_31 = arith.constant 0.000000e+00 : f32
      %39 = vector.broadcast %cst_31 : f32 to vector<8x128xf32>
      %c0_32 = arith.constant 0 : index
      %c0_33 = arith.constant 0 : index
      %40 = vector.load %arg9[%c0_32, %c0_33] : memref<8x128xf32, #tpu.memory_space<vmem>>, vector<8x128xf32>
      tpu.vector_store %arg9[%c0_32, %c0_33], %39 {strides = array<i32>} : memref<8x128xf32, #tpu.memory_space<vmem>>, vector<8x128xf32>,
    } else {
    }
    %c0 = arith.constant 0 : index
    %c0_1 = arith.constant 0 : index
    %3 = vector.load %arg2[%c0, %c0_1] : memref<8x32xf32, #tpu.memory_space<vmem>>, vector<8x32xf32>
    %c0_2 = arith.constant 0 : index
    %c0_3 = arith.constant 0 : index
    %4 = vector.load %arg3[%c0_2, %c0_3] : memref<32x128xf32, #tpu.memory_space<vmem>>, vector<32x128xf32>
    %cst = arith.constant dense<0.000000e+00> : vector<8x128xf32>
    %5 = tpu.matmul %3, %4, %cst {dimension_numbers = #tpu.dot_dimension_numbers<[1], [0], [0], [1], [0, 0, 1, 1], [], []>} : vector<8x32xf32>, vector<32x128xf32>, vector<8x128xf32> -> vector<8x128xf32>
    %c0_4 = arith.constant 0 : index
    %c0_5 = arith.constant 0 : index
    %6 = vector.load %arg4[%c0_4, %c0_5] : memref<1x128xf32, #tpu.memory_space<vmem>>, vector<1x128xf32>
    %7 = vector.broadcast %6 : vector<1x128xf32> to vector<8x128xf32>
    %8 = arith.addf %5, %7 : vector<8x128xf32>
    %c0_6 = arith.constant 0 : index
    %c0_7 = arith.constant 0 : index
    %9 = vector.load %arg7[%c0_6, %c0_7] : memref<8x1xf32, #tpu.memory_space<vmem>>, vector<8x1xf32>
    %cst_8 = arith.constant dense<0xFF800000> : vector<8xf32>
    %10 = vector.multi_reduction <maximumf>, %8, %cst_8 [1] : vector<8x128xf32> to vector<8xf32>
    %11 = vector.shape_cast %10 : vector<8xf32> to vector<8x1xf32>
    %12 = arith.maximumf %9, %11 : vector<8x1xf32>
    %13 = arith.subf %9, %12 : vector<8x1xf32>
    %14 = math.exp %13 : vector<8x1xf32>
    %15 = vector.broadcast %12 : vector<8x1xf32> to vector<8x128xf32>
    %16 = arith.subf %8, %15 : vector<8x128xf32>
    %17 = math.exp %16 : vector<8x128xf32>
    %c0_9 = arith.constant 0 : index
    %c0_10 = arith.constant 0 : index
    %18 = vector.load %arg8[%c0_9, %c0_10] : memref<8x1xf32, #tpu.memory_space<vmem>>, vector<8x1xf32>
    %19 = arith.mulf %14, %18 : vector<8x1xf32>
    %cst_11 = arith.constant dense<0.000000e+00> : vector<8xf32>
    %20 = vector.multi_reduction <add>, %17, %cst_11 [1] : vector<8x128xf32> to vector<8xf32>
    %21 = vector.shape_cast %20 : vector<8xf32> to vector<8x1xf32>
    %22 = arith.addf %19, %21 : vector<8x1xf32>
    %c0_12 = arith.constant 0 : index
    %c0_13 = arith.constant 0 : index
    %23 = vector.load %arg8[%c0_12, %c0_13] : memref<8x1xf32, #tpu.memory_space<vmem>>, vector<8x1xf32>
    tpu.vector_store %arg8[%c0_12, %c0_13], %22 {strides = array<i32>} : memref<8x1xf32, #tpu.memory_space<vmem>>, vector<8x1xf32>,
    %c0_14 = arith.constant 0 : index
    %c0_15 = arith.constant 0 : index
    %24 = vector.load %arg9[%c0_14, %c0_15] : memref<8x128xf32, #tpu.memory_space<vmem>>, vector<8x128xf32>
    %25 = vector.broadcast %14 : vector<8x1xf32> to vector<8x128xf32>
    %26 = arith.mulf %25, %24 : vector<8x128xf32>
    %c0_16 = arith.constant 0 : index
    %c0_17 = arith.constant 0 : index
    %27 = vector.load %arg5[%c0_16, %c0_17] : memref<128x128xf32, #tpu.memory_space<vmem>>, vector<128x128xf32>
    %cst_18 = arith.constant dense<0.000000e+00> : vector<8x128xf32>
    %28 = tpu.matmul %17, %27, %cst_18 {dimension_numbers = #tpu.dot_dimension_numbers<[1], [0], [0], [1], [0, 0, 1, 1], [], []>} : vector<8x128xf32>, vector<128x128xf32>, vector<8x128xf32> -> vector<8x128xf32>
    %29 = arith.addf %26, %28 : vector<8x128xf32>
    %c0_19 = arith.constant 0 : index
    %c0_20 = arith.constant 0 : index
    %30 = vector.load %arg9[%c0_19, %c0_20] : memref<8x128xf32, #tpu.memory_space<vmem>>, vector<8x128xf32>
    tpu.vector_store %arg9[%c0_19, %c0_20], %29 {strides = array<i32>} : memref<8x128xf32, #tpu.memory_space<vmem>>, vector<8x128xf32>,
    %c0_21 = arith.constant 0 : index
    %c0_22 = arith.constant 0 : index
    %31 = vector.load %arg7[%c0_21, %c0_22] : memref<8x1xf32, #tpu.memory_space<vmem>>, vector<8x1xf32>
    tpu.vector_store %arg7[%c0_21, %c0_22], %12 {strides = array<i32>} : memref<8x1xf32, #tpu.memory_space<vmem>>, vector<8x1xf32>,
    %c0_i32_23 = arith.constant 0 : i32
    %32 = arith.cmpi eq, %arg1, %c0_i32_23 : i32
    %33 = arith.extui %32 : i1 to i32
    %c0_i32_24 = arith.constant 0 : i32
    %34 = arith.cmpi ne, %33, %c0_i32_24 : i32
    scf.if %34 {
      %c0_25 = arith.constant 0 : index
      %c0_26 = arith.constant 0 : index
      %35 = vector.load %arg8[%c0_25, %c0_26] : memref<8x1xf32, #tpu.memory_space<vmem>>, vector<8x1xf32>
      %36 = tpu.reciprocal %35 {approx = true} : vector<8x1xf32> -> vector<8x1xf32>
      %37 = arith.mulf %35, %36 : vector<8x1xf32>
      %cst_27 = arith.constant 2.000000e+00 : f32
      %38 = vector.broadcast %cst_27 : f32 to vector<8x1xf32>
      %39 = arith.subf %38, %37 : vector<8x1xf32>
      %40 = arith.mulf %36, %39 : vector<8x1xf32>
      %c0_28 = arith.constant 0 : index
      %c0_29 = arith.constant 0 : index
      %41 = vector.load %arg9[%c0_28, %c0_29] : memref<8x128xf32, #tpu.memory_space<vmem>>, vector<8x128xf32>
      %42 = vector.broadcast %40 : vector<8x1xf32> to vector<8x128xf32>
      %43 = arith.mulf %41, %42 : vector<8x128xf32>
      %c0_30 = arith.constant 0 : index
      %c0_31 = arith.constant 0 : index
      %44 = vector.load %arg6[%c0_30, %c0_31] : memref<8x128xf32, #tpu.memory_space<vmem>>, vector<8x128xf32>
      tpu.vector_store %arg6[%c0_30, %c0_31], %43 {strides = array<i32>} : memref<8x128xf32, #tpu.memory_space<vmem>>, vector<8x128xf32>,
    } else {
    }
    return
  }
  func.func @transform_0(%arg0: i32, %arg1: i32) -> (i32, i32) {
    %c0_i32 = arith.constant 0 : i32
    %c0_i32_0 = arith.constant 0 : i32
    return %arg0, %c0_i32 : i32, i32
  }
  func.func @transform_1(%arg0: i32, %arg1: i32) -> (i32, i32) {
    %c0_i32 = arith.constant 0 : i32
    %c0_i32_0 = arith.constant 0 : i32
    return %c0_i32, %arg1 : i32, i32
  }
  func.func @transform_2(%arg0: i32, %arg1: i32) -> (i32, i32) {
    %c0_i32 = arith.constant 0 : i32
    %c0_i32_0 = arith.constant 0 : i32
    return %c0_i32, %arg1 : i32, i32
  }
  func.func @transform_3(%arg0: i32, %arg1: i32) -> (i32, i32) {
    %c0_i32 = arith.constant 0 : i32
    %c0_i32_0 = arith.constant 0 : i32
    return %arg1, %c0_i32 : i32, i32
  }
  func.func @transform_4(%arg0: i32, %arg1: i32) -> (i32, i32) {
    %c0_i32 = arith.constant 0 : i32
    %c0_i32_0 = arith.constant 0 : i32
    return %arg0, %c0_i32 : i32, i32
  }
}

</mosaic_0001>

<llo_original>
// kernel: tpu_custom_call.1
$region0: #{tpu_custom_call.1}
  #allocation0 [shape = 'u32[]', space=smem, size = 0x4, offset = 0x4, fixed_abs, tag = 'smem constant byte address 0x4 - core index']
  #allocation1 [shape = 'u32[144,128]{1,0:T(1,128)}', space=vmem, size = 0x12000, scoped, tag = 'internal scratch']
  #allocation2 [shape = 'f32[8,1]{1,0:T(8,128)}', space=vmem, size = 0x1000, scoped, tag = 'scratch operand']
  #allocation3 [shape = 'f32[8,1]{1,0:T(8,128)}', space=vmem, size = 0x1000, scoped, tag = 'scratch operand']
  #allocation4 [shape = 'f32[8,128]{1,0:T(8,128)}', space=vmem, size = 0x1000, scoped, tag = 'scratch operand']
  %s0 = inlined_call_operand.hbm [shape: f32[8,32], index: 0, kind: input, shape index: {}]
  %s1 = inlined_call_operand.hbm [shape: f32[32,128], index: 1, kind: input, shape index: {}]
  %s2 = inlined_call_operand.vmem [shape: f32[1,128], index: 2, kind: input, shape index: {}]
  %s3 = inlined_call_operand.hbm [shape: f32[128,128], index: 3, kind: input, shape index: {}]
  %s4 = inlined_call_operand.hbm [shape: f32[8,128], index: 4, kind: output, shape index: {}]
  %s5 = sld [smem:[#allocation0]]
  $region46: #{tpu_custom_call.1} parent=0
    _
  %s7 = ssub.s32 1, %s5
  %s8 = scalar_select 0, %s7, %s5
  $region1: #{tpu_custom_call.1} parent=0
    #allocation5 [shape = 'u8[4096]{0}', space=vmem, size = 0x1000, scoped, tag = 'input window, operand 0, single buffered']
    #allocation6 [shape = 's32[1]{0}', space=sflag, size = 0x4, scoped, tag = 'scoped memory for tpu_custom_call.1']
    #allocation7 [shape = 's32[1]{0}', space=sflag, size = 0x4, scoped, tag = 'scoped memory for tpu_custom_call.1']
    #allocation8 [shape = 'u8[16384]{0}', space=vmem, size = 0x4000, scoped, tag = 'input window, operand 1, single buffered']
    #allocation9 [shape = 's32[1]{0}', space=sflag, size = 0x4, scoped, tag = 'scoped memory for tpu_custom_call.1']
    #allocation10 [shape = 'u8[65536]{0}', space=vmem, size = 0x10000, scoped, tag = 'input window, operand 3, single buffered']
    #allocation11 [shape = 'u8[4096]{0}', space=vmem, size = 0x1000, scoped, tag = 'output window, operand 0, single buffered']
    %9 = vsyncpa [#allocation6], 0
    %10 = vsyncpa [#allocation9], 0
    %11 = vsyncpa [#allocation7], 0
    // Predicated region
    $region2: #{tpu_custom_call.1} parent=1 // pred_check
      _
    $region3: #{tpu_custom_call.1} parent=1 // pred_check_branch
      %13 = sbr.rel (0) target = $region5
    $region4: #{tpu_custom_call.1} parent=1 // pred_region
      %s15 = ssub.s32 128, 128
      %16 = vsyncadd [#allocation6], %s15
      %s18 = sshll.u32 [#allocation5], 4
      %s19 = int_to_ptr.vmem [resolvable:$true] %s18
      %21 = dma.hbm_to_vmem [thread:$0]  %s0, 128, %s19, [#allocation6]
    $region5: #{tpu_custom_call.1} parent=1 // pred_fallthru
      _
    // Predicated region
    $region6: #{tpu_custom_call.1} parent=1 // pred_check
      _
    $region7: #{tpu_custom_call.1} parent=1 // pred_check_branch
      %23 = sbr.rel (0) target = $region9
    $region8: #{tpu_custom_call.1} parent=1 // pred_region
      %s25 = ssub.s32 512, 512
      %26 = vsyncadd [#allocation9], %s25
      %s27 = sshll.u32 [#allocation8], 4
      %s28 = int_to_ptr.vmem [resolvable:$true] %s27
      %33 = dma.hbm_to_vmem [thread:$0]  %s1, 512, %s28, [#allocation9], 128, 128, 8
    $region9: #{tpu_custom_call.1} parent=1 // pred_fallthru
      _
    // Predicated region
    $region10: #{tpu_custom_call.1} parent=1 // pred_check
      _
    $region11: #{tpu_custom_call.1} parent=1 // pred_check_branch
      %35 = sbr.rel (0) target = $region13
    $region12: #{tpu_custom_call.1} parent=1 // pred_region
      _
    $region13: #{tpu_custom_call.1} parent=1 // pred_fallthru
      _
    // Predicated region
    $region14: #{tpu_custom_call.1} parent=1 // pred_check
      _
    $region15: #{tpu_custom_call.1} parent=1 // pred_check_branch
      %37 = sbr.rel (0) target = $region17
    $region16: #{tpu_custom_call.1} parent=1 // pred_region
      %s39 = ssub.s32 2048, 2048
      %40 = vsyncadd [#allocation9], %s39
      %s41 = sshll.u32 [#allocation10], 4
      %s42 = int_to_ptr.vmem [resolvable:$true] %s41
      %47 = dma.hbm_to_vmem [thread:$0]  %s3, 2048, %s42, [#allocation9], 128, 128, 8
    $region17: #{tpu_custom_call.1} parent=1 // pred_fallthru
      _
    // Predicated region
    $region18: #{tpu_custom_call.1} parent=1 // pred_check
      _
    $region19: #{tpu_custom_call.1} parent=1 // pred_check_branch
      %49 = sbr.rel (0) target = $region21
    $region20: #{tpu_custom_call.1} parent=1 // pred_region
      %50 = dma.done [#allocation6], 128
    $region21: #{tpu_custom_call.1} parent=1 // pred_fallthru
      _
    // Predicated region
    $region22: #{tpu_custom_call.1} parent=1 // pred_check
      _
    $region23: #{tpu_custom_call.1} parent=1 // pred_check_branch
      %52 = sbr.rel (0) target = $region25
    $region24: #{tpu_custom_call.1} parent=1 // pred_region
      %53 = dma.done [#allocation9], 512
    $region25: #{tpu_custom_call.1} parent=1 // pred_fallthru
      _
    // Predicated region
    $region26: #{tpu_custom_call.1} parent=1 // pred_check
      _
    $region27: #{tpu_custom_call.1} parent=1 // pred_check_branch
      %55 = sbr.rel (0) target = $region29
    $region28: #{tpu_custom_call.1} parent=1 // pred_region
      %56 = dma.done [#allocation9], 2048
    $region29: #{tpu_custom_call.1} parent=1 // pred_fallthru
      _
    %p57 = scmp.eq.s32.totalorder 0, 0
    // Predicated region
    $region30: #{tpu_custom_call.1} parent=1 // pred_check
      %p58 = pneg %p57
    $region31: #{tpu_custom_call.1} parent=1 // pred_check_branch
      %60 = sbr.rel (%p58) target = $region33
    $region32: #{tpu_custom_call.1} parent=1 // pred_region
      %vm61 = vcmask 7168
      %62 = vst.msk [vmem:[#allocation2] sm:$0xff] %vm61, -1e+30
      %63 = vst.msk [vmem:[#allocation3] sm:$0xff] %vm61, 0.0
      %64 = vst [vmem:[#allocation4] sm:$0xff] 0.0
    $region33: #{tpu_custom_call.1} parent=1 // pred_fallthru
      _
    %v65 = vld [vmem:[#allocation5] sm:$0xff]
    %v66 = vld [vmem:[#allocation8] sm:$0xff]
    %v67 = vld [vmem:[#allocation8 + $0x8] sm:$0xff]
    %v68 = vld [vmem:[#allocation8 + $0x10] sm:$0xff]
    %v69 = vld [vmem:[#allocation8 + $0x18] sm:$0xff]
    %v70 = vld [vmem:[%s2] sm:$0x1]
    %v72 = vlaneseq
    %v73 = vshrl.u32 %v72, 7
    %v74 = vsub.s32 0, %v73
    %v75 = vrot.slane %v70, %v74
    %vm77 = vcmask 261120
    %v79 = vsel %vm77, %v65, 0
    %81 = vmatprep.subr.mxu0 0.0
    %82 = vmatpush1.msra.mxu0 0.0
    %83 = vmatprep.subr.mxu0 0.0
    %84 = vmatpush1.msra.mxu0 0.0
    %85 = vmatprep.subr.mxu0 0.0
    %86 = vmatpush1.msra.mxu0 0.0
    %87 = vmatprep.subr.mxu0 0.0
    %88 = vmatpush1.msra.mxu0 0.0
    %89 = vmatprep.subr.mxu0 0.0
    %90 = vmatpush1.msra.mxu0 0.0
    %91 = vmatprep.subr.mxu0 0.0
    %92 = vmatpush1.msra.mxu0 0.0
    %93 = vmatprep.subr.mxu0 0.0
    %94 = vmatpush1.msra.mxu0 0.0
    %95 = vmatprep.subr.mxu0 0.0
    %96 = vmatpush1.msra.mxu0 0.0
    %97 = vmatprep.subr.mxu0 0.0
    %98 = vmatpush1.msra.mxu0 0.0
    %99 = vmatprep.subr.mxu0 0.0
    %100 = vmatpush1.msra.mxu0 0.0
    %101 = vmatprep.subr.mxu0 0.0
    %102 = vmatpush1.msra.mxu0 0.0
    %103 = vmatprep.subr.mxu0 0.0
    %104 = vmatpush1.msra.mxu0 0.0
    %105 = vmatprep.subr.mxu0 0.0
    %106 = vmatpush1.msra.mxu0 %v69
    %107 = vmatprep.subr.mxu0 0.0
    %108 = vmatpush1.msra.mxu0 %v68
    %109 = vmatprep.subr.mxu0 0.0
    %110 = vmatpush1.msra.mxu0 %v67
    %111 = vmatprep.subr.mxu0 0.0
    %112 = vmatpush1.msra.mxu0 %v66
    %113 = vmatprep.subr.mxu0 0.0
    %114 = vmatpush2.msra.mxu0 0.0
    %115 = vmatprep.subr.mxu0 0.0
    %116 = vmatpush2.msra.mxu0 0.0
    %117 = vmatprep.subr.mxu0 0.0
    %118 = vmatpush2.msra.mxu0 0.0
    %119 = vmatprep.subr.mxu0 0.0
    %120 = vmatpush2.msra.mxu0 0.0
    %121 = vmatprep.subr.mxu0 0.0
    %122 = vmatpush2.msra.mxu0 0.0
    %123 = vmatprep.subr.mxu0 0.0
    %124 = vmatpush2.msra.mxu0 0.0
    %125 = vmatprep.subr.mxu0 0.0
    %126 = vmatpush2.msra.mxu0 0.0
    %127 = vmatprep.subr.mxu0 0.0
    %128 = vmatpush2.msra.mxu0 0.0
    %129 = vmatprep.subr.mxu0 0.0
    %130 = vmatpush2.msra.mxu0 0.0
    %131 = vmatprep.subr.mxu0 0.0
    %132 = vmatpush2.msra.mxu0 0.0
    %133 = vmatprep.subr.mxu0 0.0
    %134 = vmatpush2.msra.mxu0 0.0
    %135 = vmatprep.subr.mxu0 0.0
    %136 = vmatpush2.msra.mxu0 0.0
    %137 = vmatprep.subr.mxu0 0.0
    %138 = vmatpush2.msra.mxu0 0.0
    %139 = vmatprep.subr.mxu0 0.0
    %140 = vmatpush2.msra.mxu0 0.0
    %141 = vmatprep.subr.mxu0 0.0
    %142 = vmatpush2.msra.mxu0 0.0
    %143 = vmatprep.subr.mxu0 0.0
    %144 = vmatpush2.msra.mxu0 0.0
    %145 = vmatprep.mubr.f32.mxu0 0.0
    %146 = vmatmul.mubr.f32.gmra.mxu0 %v79
    %v147 = vpop.f32.mrf.mxu0
    %v148 = vadd.f32 %v75, %v147
    %v149 = vpop.f32.mrf.mxu0
    %150 = vdwg.mxu0
    %v151 = vld [vmem:[#allocation2] sm:$0xff]
    %152 = vmax.xlane.f32.xlu0 %v148
    %v153 = vpop.xlane.xlu0 %152
    %v154 = vmax.f32 %v151, %v153
    %v155 = vsub.f32 %v151, %v154
    %v156 = vmul.f32 %v155, 1.442695
    %v157 = vpow.pop %v156
    %159 = vset.pattern.permute.xlu0 0
    %160 = vperm.xlu0 %159, %v154
    %v161 = vpop.permute.xlu0 %160
    %v163 = vsub.f32 %v148, %v161
    %v164 = vmul.f32 %v163, 1.442695
    %v165 = vpow.pop %v164
    %v166 = vld [vmem:[#allocation3] sm:$0xff]
    %v167 = vmul.f32 %v157, %v166
    %168 = vadd.xlane.f32.xlu0 %v165
    %v169 = vpop.xlane.xlu0 %168
    %v170 = vadd.f32 %v167, %v169
    %vm171 = vcmask 7168
    %172 = vst.msk [vmem:[#allocation3] sm:$0xff] %vm171, %v170
    %v173 = vld [vmem:[#allocation4] sm:$0xff]
    %175 = vset.pattern.permute.xlu0 0
    %176 = vperm.xlu0 %175, %v157
    %v177 = vpop.permute.xlu0 %176
    %v179 = vmul.f32 %v177, %v173
    %v180 = vld [vmem:[#allocation10] sm:$0xff]
    %v181 = vld [vmem:[#allocation10 + $0x8] sm:$0xff]
    %v182 = vld [vmem:[#allocation10 + $0x10] sm:$0xff]
    %v183 = vld [vmem:[#allocation10 + $0x18] sm:$0xff]
    %v184 = vld [vmem:[#allocation10 + $0x20] sm:$0xff]
    %v185 = vld [vmem:[#allocation10 + $0x28] sm:$0xff]
    %v186 = vld [vmem:[#allocation10 + $0x30] sm:$0xff]
    %v187 = vld [vmem:[#allocation10 + $0x38] sm:$0xff]
    %v188 = vld [vmem:[#allocation10 + $0x40] sm:$0xff]
    %v189 = vld [vmem:[#allocation10 + $0x48] sm:$0xff]
    %v190 = vld [vmem:[#allocation10 + $0x50] sm:$0xff]
    %v191 = vld [vmem:[#allocation10 + $0x58] sm:$0xff]
    %v192 = vld [vmem:[#allocation10 + $0x60] sm:$0xff]
    %v193 = vld [vmem:[#allocation10 + $0x68] sm:$0xff]
    %v194 = vld [vmem:[#allocation10 + $0x70] sm:$0xff]
    %v195 = vld [vmem:[#allocation10 + $0x78] sm:$0xff]
    %196 = vmatprep.subr.mxu0 0.0
    %197 = vmatpush1.msra.mxu0 %v195
    %198 = vmatprep.subr.mxu0 0.0
    %199 = vmatpush1.msra.mxu0 %v194
    %200 = vmatprep.subr.mxu0 0.0
    %201 = vmatpush1.msra.mxu0 %v193
    %202 = vmatprep.subr.mxu0 0.0
    %203 = vmatpush1.msra.mxu0 %v192
    %204 = vmatprep.subr.mxu0 0.0
    %205 = vmatpush1.msra.mxu0 %v191
    %206 = vmatprep.subr.mxu0 0.0
    %207 = vmatpush1.msra.mxu0 %v190
    %208 = vmatprep.subr.mxu0 0.0
    %209 = vmatpush1.msra.mxu0 %v189
    %210 = vmatprep.subr.mxu0 0.0
    %211 = vmatpush1.msra.mxu0 %v188
    %212 = vmatprep.subr.mxu0 0.0
    %213 = vmatpush1.msra.mxu0 %v187
    %214 = vmatprep.subr.mxu0 0.0
    %215 = vmatpush1.msra.mxu0 %v186
    %216 = vmatprep.subr.mxu0 0.0
    %217 = vmatpush1.msra.mxu0 %v185
    %218 = vmatprep.subr.mxu0 0.0
    %219 = vmatpush1.msra.mxu0 %v184
    %220 = vmatprep.subr.mxu0 0.0
    %221 = vmatpush1.msra.mxu0 %v183
    %222 = vmatprep.subr.mxu0 0.0
    %223 = vmatpush1.msra.mxu0 %v182
    %224 = vmatprep.subr.mxu0 0.0
    %225 = vmatpush1.msra.mxu0 %v181
    %226 = vmatprep.subr.mxu0 0.0
    %227 = vmatpush1.msra.mxu0 %v180
    %228 = vmatprep.subr.mxu0 0.0
    %229 = vmatpush2.msra.mxu0 0.0
    %230 = vmatprep.subr.mxu0 0.0
    %231 = vmatpush2.msra.mxu0 0.0
    %232 = vmatprep.subr.mxu0 0.0
    %233 = vmatpush2.msra.mxu0 0.0
    %234 = vmatprep.subr.mxu0 0.0
    %235 = vmatpush2.msra.mxu0 0.0
    %236 = vmatprep.subr.mxu0 0.0
    %237 = vmatpush2.msra.mxu0 0.0
    %238 = vmatprep.subr.mxu0 0.0
    %239 = vmatpush2.msra.mxu0 0.0
    %240 = vmatprep.subr.mxu0 0.0
    %241 = vmatpush2.msra.mxu0 0.0
    %242 = vmatprep.subr.mxu0 0.0
    %243 = vmatpush2.msra.mxu0 0.0
    %244 = vmatprep.subr.mxu0 0.0
    %245 = vmatpush2.msra.mxu0 0.0
    %246 = vmatprep.subr.mxu0 0.0
    %247 = vmatpush2.msra.mxu0 0.0
    %248 = vmatprep.subr.mxu0 0.0
    %249 = vmatpush2.msra.mxu0 0.0
    %250 = vmatprep.subr.mxu0 0.0
    %251 = vmatpush2.msra.mxu0 0.0
    %252 = vmatprep.subr.mxu0 0.0
    %253 = vmatpush2.msra.mxu0 0.0
    %254 = vmatprep.subr.mxu0 0.0
    %255 = vmatpush2.msra.mxu0 0.0
    %256 = vmatprep.subr.mxu0 0.0
    %257 = vmatpush2.msra.mxu0 0.0
    %258 = vmatprep.subr.mxu0 0.0
    %259 = vmatpush2.msra.mxu0 0.0
    %260 = vmatprep.mubr.f32.mxu0 0.0
    %261 = vmatmul.mubr.f32.gmra.mxu0 %v165
    %v262 = vpop.f32.mrf.mxu0
    %v263 = vadd.f32 0.0, %v262
    %v264 = vpop.f32.mrf.mxu0
    %265 = vdwg.mxu0
    %v266 = vadd.f32 %v179, %v263
    %267 = vst [vmem:[#allocation4] sm:$0xff] %v266
    %268 = vst.msk [vmem:[#allocation2] sm:$0xff] %vm171, %v154
    // Predicated region
    $region34: #{tpu_custom_call.1} parent=1 // pred_check
      %p269 = pneg %p57
    $region35: #{tpu_custom_call.1} parent=1 // pred_check_branch
      %271 = sbr.rel (%p269) target = $region37
    $region36: #{tpu_custom_call.1} parent=1 // pred_region
      %v272 = vld [vmem:[#allocation3] sm:$0xff]
      %v273 = vrcp.pop %v272
      %v274 = vmul.f32 %v272, %v273
      %v275 = vsub.f32 2.0, %v274
      %v276 = vmul.f32 %v273, %v275
      %v277 = vld [vmem:[#allocation4] sm:$0xff]
      %279 = vset.pattern.permute.xlu0 0
      %280 = vperm.xlu0 %279, %v276
      %v281 = vpop.permute.xlu0 %280
      %v283 = vmul.f32 %v277, %v281
      %284 = vst [vmem:[#allocation11] sm:$0xff] %v283
    $region37: #{tpu_custom_call.1} parent=1 // pred_fallthru
      _
    // Predicated region
    $region38: #{tpu_custom_call.1} parent=1 // pred_check
      _
    $region39: #{tpu_custom_call.1} parent=1 // pred_check_branch
      %286 = sbr.rel (0) target = $region41
    $region40: #{tpu_custom_call.1} parent=1 // pred_region
      %s288 = ssub.s32 128, 128
      %289 = vsyncadd [#allocation7], %s288
      %s291 = sshll.u32 [#allocation11], 4
      %s292 = int_to_ptr.vmem [resolvable:$true] %s291
      %294 = dma.vmem_to_hbm [thread:$0]  %s292, 128, %s4, [#allocation7]
    $region41: #{tpu_custom_call.1} parent=1 // pred_fallthru
      _
    // Predicated region
    $region42: #{tpu_custom_call.1} parent=1 // pred_check
      _
    $region43: #{tpu_custom_call.1} parent=1 // pred_check_branch
      %296 = sbr.rel (0) target = $region45
    $region44: #{tpu_custom_call.1} parent=1 // pred_region
      %297 = dma.done [#allocation7], 128
    $region45: #{tpu_custom_call.1} parent=1 // pred_fallthru
      _
    %298 = vsyncpa [#allocation6], 1
    %299 = vsyncpa [#allocation9], 1
    %300 = vsyncpa [#allocation7], 1

</llo_original>
